<compile_context>
chip_gen: v5e
topology: v5e:2x2
jax: 0.10.0
libtpu: 0.0.40
codegen_flags: <defaults>
</compile_context>

<pallas_src>
import functools
import math

import jax
import jax.numpy as jnp
from jax import lax
from jax.experimental import pallas as pl
from jax.experimental.pallas import tpu as pltpu


# ----------------------------------------------------------------------------
# Helpers
# ----------------------------------------------------------------------------
def _pick_tile(n, target=256, align=8):
    """Largest t <= min(n, target) that divides n and is 8-aligned (or t == n)."""
    t = min(n, target)
    while t > 1:
        if n % t == 0 and (t % align == 0 or t == n):
            return t
        t -= 1
    return n


def _pick_head_group(nb_heads, head_dim):
    """Smallest group G dividing nb_heads with G*head_dim % 128 == 0 (lane-dense
    blocks); falls back to all heads (block == full hidden width)."""
    for g in range(1, nb_heads + 1):
        if nb_heads % g == 0 and (g * head_dim) % 128 == 0:
            return g
    return nb_heads


# ----------------------------------------------------------------------------
# Positional-logit skew (band -> window layout)
# ----------------------------------------------------------------------------
def _skew_band(pos, width, off, use_roll):
    """Skew (tq, span) positional logits into the (tq, width) window layout:
    out[i, i + s] = pos[i, s], zeros elsewhere.  width == tq + span."""
    tq, span = pos.shape
    if use_roll:
        # Single XLU pass: per-row rotate by the row index (strided dynamic roll).
        wpad = ((tq + span + 127) // 128) * 128          # lane-aligned, no wrap
        padded = jnp.pad(pos, ((0, 0), (0, wpad - span)))
        rolled = pltpu.roll(padded, 0, 1, stride=1, stride_axis=0)
        return rolled[:, :width]
    # Fallback: span static-slice + masked adds (no lane reductions).
    acc = jnp.zeros((tq, width), jnp.float32)
    for s in range(span):
        acc = acc + jnp.where(off == s, pos[:, s:s + 1], 0.0)
    return acc


_ROLL_SKEW_OK = {}


def _roll_skew_supported(q_tile, span):
    """One-time probe (per tile shape): check the strided pltpu.roll skew lowers
    and matches the expected skew; otherwise use the unrolled fallback."""
    key = (q_tile, span)
    if key in _ROLL_SKEW_OK:
        return _ROLL_SKEW_OK[key]
    width = q_tile + span
    x = (jnp.arange(q_tile * span, dtype=jnp.float32) + 1.0).reshape(q_tile, span)

    def kern(x_ref, o_ref):
        o_ref[...] = _skew_band(x_ref[...], width, None, True)

    ok = False
    try:
        got = pl.pallas_call(
            kern,
            out_shape=jax.ShapeDtypeStruct((q_tile, width), jnp.float32),
            grid=(1,),
            in_specs=[pl.BlockSpec((q_tile, span), lambda i: (0, 0))],
            out_specs=pl.BlockSpec((q_tile, width), lambda i: (0, 0)),
        )(x)
        got = jax.block_until_ready(got)
        exp = jnp.stack([
            jnp.concatenate([jnp.zeros((i,), jnp.float32), x[i],
                             jnp.zeros((width - span - i,), jnp.float32)])
            for i in range(q_tile)
        ])
        ok = bool(jnp.array_equal(got, exp))
    except Exception:
        ok = False
    _ROLL_SKEW_OK[key] = ok
    return ok


# ----------------------------------------------------------------------------
# Row-tiled linear projection (nn.Linear, no bias)
# ----------------------------------------------------------------------------
def _linear_kernel(x_ref, wt_ref, o_ref):
    o_ref[...] = jnp.dot(
        x_ref[...], wt_ref[...], preferred_element_type=jnp.float32
    ).astype(o_ref.dtype)


def linear_pallas(x, wt, row_tile=256):
    """x: (N, Hin) @ wt: (Hin, Hout) -> (N, Hout). Rows tiled, weight resident."""
    n, hin = x.shape
    hout = wt.shape[1]
    tn = _pick_tile(n, row_tile)
    return pl.pallas_call(
        _linear_kernel,
        out_shape=jax.ShapeDtypeStruct((n, hout), x.dtype),
        grid=(n // tn,),
        in_specs=[
            pl.BlockSpec((tn, hin), lambda i: (i, 0)),
            pl.BlockSpec((hin, hout), lambda i: (0, 0)),   # weight stays resident
        ],
        out_specs=pl.BlockSpec((tn, hout), lambda i: (i, 0)),
        compiler_params=pltpu.CompilerParams(
            dimension_semantics=("parallel",),
            vmem_limit_bytes=32 * 1024 * 1024,
        ),
    )(x, wt)


# ----------------------------------------------------------------------------
# Banded sequential attention kernel
# ----------------------------------------------------------------------------
def _attn_kernel(q_ref, k_ref, v_ref, pe_ref, o_ref, *, span, head_dim, use_roll):
    f32 = jnp.float32
    tq, gd = q_ref.shape
    w = k_ref.shape[0]                 # q_tile + span (key window rows)
    d = head_dim
    g = gd // d                        # heads handled by this grid step

    # Fold 1/sqrt(head_dim) into q once (covers content & positional terms).
    q = q_ref[...] * (1.0 / math.sqrt(d))   # native dtype (bf16 stays bf16)
    k = k_ref[...]
    v = v_ref[...]
    pe = pe_ref[...].astype(q.dtype)        # (d, span)

    # Band structure is tile-invariant: local query row i sees cols [i, i+span).
    row = lax.broadcasted_iota(jnp.int32, (tq, w), 0)
    col = lax.broadcasted_iota(jnp.int32, (tq, w), 1)
    off = col - row
    neg_bias = jnp.where((off >= 0) & (off < span), 0.0, -1e30).astype(f32)

    outs = []
    for h in range(g):                 # small unroll over heads in the group
        sl = slice(h * d, (h + 1) * d)
        qh, kh, vh = q[:, sl], k[:, sl], v[:, sl]
        logits = lax.dot_general(qh, kh, (((1,), (1,)), ((), ())),
                                 preferred_element_type=f32)      # (tq, w)
        pos = jnp.dot(qh, pe, preferred_element_type=f32)         # (tq, span)
        logits = logits + _skew_band(pos, w, off, use_roll) + neg_bias
        logits = logits - jnp.max(logits, axis=-1, keepdims=True)
        p = jnp.exp(logits)
        denom = jnp.sum(p, axis=-1, keepdims=True)
        pv = jnp.dot(p.astype(vh.dtype), vh, preferred_element_type=f32)
        outs.append(pv * pl.reciprocal(denom, approx=True))       # EUP reciprocal
    # One lane-dense (tq, g*d) store, already in the final (B, M, H) head layout.
    o_ref[...] = jnp.concatenate(outs, axis=-1).astype(o_ref.dtype)


def seq_attention_pallas(q, kw, vw, key_pe, *, span, head_dim, group, q_tile,
                         v_col_block_off=0):
    """q: (B, M, H); kw/vw: (B, nq, q_tile+span, C) windowed K/V (C = H, or 2H when
    the fused K|V projection slab is reused); key_pe: (1, D, span) -> (B, M, H)."""
    B, M, H = q.shape
    nq = M // q_tile
    W = q_tile + span
    GD = group * head_dim
    n_groups = H // GD
    assert kw.shape[2] == W and vw.shape[2] == W

    use_roll = _roll_skew_supported(q_tile, span)
    kern = functools.partial(_attn_kernel, span=span, head_dim=head_dim,
                             use_roll=use_roll)
    return pl.pallas_call(
        kern,
        out_shape=jax.ShapeDtypeStruct((B, M, H), q.dtype),
        grid=(B, n_groups, nq),
        in_specs=[
            pl.BlockSpec((None, q_tile, GD), lambda b, g, i: (b, i, g)),
            pl.BlockSpec((None, None, W, GD), lambda b, g, i: (b, i, 0, g)),
            pl.BlockSpec((None, None, W, GD),
                         lambda b, g, i: (b, i, 0, g + v_col_block_off)),
            pl.BlockSpec((None, head_dim, span), lambda b, g, i: (0, 0, 0)),
        ],
        out_specs=pl.BlockSpec((None, q_tile, GD), lambda b, g, i: (b, i, g)),
        compiler_params=pltpu.CompilerParams(
            dimension_semantics=("parallel", "parallel", "parallel"),
            vmem_limit_bytes=32 * 1024 * 1024,
        ),
    )(q, kw, vw, key_pe)


# ----------------------------------------------------------------------------
# Module wrapper
# ----------------------------------------------------------------------------
def _window_kv(x, q_tile, span, nq):
    """(B, L, C) -> (B, nq, q_tile+span, C): K/V rows needed by query tile i."""
    return jnp.stack(
        [x[:, i * q_tile: i * q_tile + q_tile + span, :] for i in range(nq)],
        axis=1)


def multihead_seq_attention(query, key, value, key_pe, params, nb_heads,
                            q_tile=None):
    B, M, H = query.shape
    L = key.shape[1]
    K = nb_heads
    assert H % K == 0
    D = H // K
    S = key_pe.shape[-1]
    assert L == M + S, "key/value length must be query_len + attn_span"

    if q_tile is None:
        q_tile = _pick_tile(M, 256)
    assert M % q_tile == 0 and (q_tile % 8 == 0 or q_tile == M)
    nq = M // q_tile
    G = _pick_head_group(K, D)
    GD = G * D

    # Projections: row-tiled Pallas matmuls, weights resident in VMEM.
    q2 = linear_pallas(query.reshape(B * M, H), params["Wq"].T).reshape(B, M, H)

    if (key is value) and GD % 128 == 0:
        # Fused K|V projection: one read of the key/value input, one matmul.
        wkv_t = jnp.concatenate([params["Wk"].T, params["Wv"].T], axis=1)  # (H, 2H)
        kv = linear_pallas(key.reshape(B * L, H), wkv_t).reshape(B, L, 2 * H)
        kw = _window_kv(kv, q_tile, S, nq)
        vw = kw                      # same slab; V columns selected via index_map
        v_off = H // GD
    else:
        k2 = linear_pallas(key.reshape(B * L, H), params["Wk"].T).reshape(B, L, H)
        v2 = linear_pallas(value.reshape(B * L, H), params["Wv"].T).reshape(B, L, H)
        kw = _window_kv(k2, q_tile, S, nq)
        vw = _window_kv(v2, q_tile, S, nq)
        v_off = 0

    out = seq_attention_pallas(q2, kw, vw, key_pe, span=S, head_dim=D, group=G,
                               q_tile=q_tile, v_col_block_off=v_off)
    # Output is already laid out as (B, M, K*D) == (B, M, H): no head transpose.
    return linear_pallas(out.reshape(B * M, H), params["Wo"].T).reshape(B, M, H)


# ----------------------------------------------------------------------------
# Pure-JAX reference (mirrors the PyTorch skew/unskew code exactly)
# ----------------------------------------------------------------------------
def _head_reshape(x, K, D):
    B, T, _ = x.shape
    return x.reshape(B, T, K, D).transpose(0, 2, 1, 3).reshape(B * K, T, D)


def _unskew_ref(X):
    B, M, Lt = X.shape
    L = Lt - M
    Xf = X.reshape(B, -1)
    Xf = jnp.pad(Xf, ((0, 0), (0, M)))
    Xr = Xf.reshape(B, M, M + L + 1)
    return Xr[:, :, :L]


def _skew_ref(X, pad_value):
    B, M, L = X.shape
    Xp = jnp.pad(X, ((0, 0), (0, 0), (0, M + 1)), constant_values=pad_value)
    Xf = Xp.reshape(B, -1)
    Xf = Xf[:, :-M]
    return Xf.reshape(B, M, M + L)


def reference_forward(query, key, value, key_pe, params, nb_heads):
    B, M, H = query.shape
    K = nb_heads
    D = H // K
    q = query @ params["Wq"].T
    v = value @ params["Wv"].T
    k = key @ params["Wk"].T
    q = _head_reshape(q, K, D)
    k = _head_reshape(k, K, D)
    v = _head_reshape(v, K, D)
    attn_cont = jnp.matmul(q, jnp.swapaxes(k, -1, -2))
    attn_cont = _unskew_ref(attn_cont)
    attn_pos = jnp.matmul(q, key_pe)
    attn = (attn_cont + attn_pos) / math.sqrt(D)
    attn = jax.nn.softmax(attn, axis=-1)
    attn_sk = _skew_ref(attn, 0.0)
    out = jnp.matmul(attn_sk, v)
    out = out.reshape(B, K, M, D).transpose(0, 2, 1, 3).reshape(B, M, H)
    return out @ params["Wo"].T


# ----------------------------------------------------------------------------
if __name__ == "__main__":
    H, K, S = 256, 8, 16        # hidden_size, nb_heads, attn_span
    B, M = 2, 32                # batch, query length
    D = H // K
    L = M + S                   # key/value length (cache of S previous steps)

    root = jax.random.PRNGKey(0)
    ks = jax.random.split(root, 8)
    query = jax.random.normal(ks[0], (B, M, H), jnp.float32)
    kv_inp = jax.random.normal(ks[1], (B, L, H), jnp.float32)   # key == value input
    key_pe = jax.random.normal(ks[2], (1, D, S), jnp.float32) * 0.1

    scale = 1.0 / math.sqrt(H)
    params = {
        "Wq": jax.random.normal(ks[4], (H, H), jnp.float32) * scale,
        "Wk": jax.random.normal(ks[5], (H, H), jnp.float32) * scale,
        "Wv": jax.random.normal(ks[6], (H, H), jnp.float32) * scale,
        "Wo": jax.random.normal(ks[7], (H, H), jnp.float32) * scale,
    }

    # q_tile=16 -> 2 query tiles, 2 head groups (G*D = 128 lanes), grid (2, 2, 2).
    out = multihead_seq_attention(query, kv_inp, kv_inp, key_pe, params, K,
                                  q_tile=16)
    out = jax.block_until_ready(out)

    ref = reference_forward(query, kv_inp, kv_inp, key_pe, params, K)
    ref = jax.block_until_ready(ref)

    err = float(jnp.max(jnp.abs(out - ref)))
    ref_scale = float(jnp.max(jnp.abs(ref))) + 1e-6
    if not (err <= 1e-2 * ref_scale):
        raise AssertionError(
            f"Pallas output mismatch vs reference: max abs err={err}, "
            f"ref scale={ref_scale}")
    print("KERNEL_OK")
</pallas_src>

<mosaic_0001>
module attributes {stable_mosaic.version = 11 : i64} {
  func.func @_linear_kernel(%arg0: i32, %arg1: memref<64x256xf32, #tpu.memory_space<vmem>>, %arg2: memref<256x256xf32, #tpu.memory_space<vmem>>, %arg3: memref<64x256xf32, #tpu.memory_space<vmem>>) attributes {dimension_semantics = [#tpu.dimension_semantics<parallel>], iteration_bounds = array<i64: 1>, scalar_prefetch = 0 : i64, scratch_operands = 0 : i64, tpu.core_type = #tpu.core_type<tc>, window_params = [{transform_indices = @transform_0, window_bounds = array<i64: 64, 256>}, {pipeline_mode = #tpu.pipeline_mode<synchronous>, transform_indices = @transform_1, window_bounds = array<i64: 256, 256>}, {transform_indices = @transform_2, window_bounds = array<i64: 64, 256>}]} {
    %c0 = arith.constant 0 : index
    %c0_0 = arith.constant 0 : index
    %0 = vector.load %arg1[%c0, %c0_0] : memref<64x256xf32, #tpu.memory_space<vmem>>, vector<64x256xf32>
    %c0_1 = arith.constant 0 : index
    %c0_2 = arith.constant 0 : index
    %1 = vector.load %arg2[%c0_1, %c0_2] : memref<256x256xf32, #tpu.memory_space<vmem>>, vector<256x256xf32>
    %cst = arith.constant dense<0.000000e+00> : vector<64x256xf32>
    %2 = tpu.matmul %0, %1, %cst {dimension_numbers = #tpu.dot_dimension_numbers<[1], [0], [0], [1], [0, 0, 1, 1], [], []>} : vector<64x256xf32>, vector<256x256xf32>, vector<64x256xf32> -> vector<64x256xf32>
    %c0_3 = arith.constant 0 : index
    %c0_4 = arith.constant 0 : index
    %3 = vector.load %arg3[%c0_3, %c0_4] : memref<64x256xf32, #tpu.memory_space<vmem>>, vector<64x256xf32>
    tpu.vector_store %arg3[%c0_3, %c0_4], %2 {strides = array<i32>} : memref<64x256xf32, #tpu.memory_space<vmem>>, vector<64x256xf32>,
    return
  }
  func.func @transform_0(%arg0: i32) -> (i32, i32) {
    %c0_i32 = arith.constant 0 : i32
    %c0_i32_0 = arith.constant 0 : i32
    return %arg0, %c0_i32 : i32, i32
  }
  func.func @transform_1(%arg0: i32) -> (i32, i32) {
    %c0_i32 = arith.constant 0 : i32
    %c0_i32_0 = arith.constant 0 : i32
    %c0_i32_1 = arith.constant 0 : i32
    return %c0_i32, %c0_i32_0 : i32, i32
  }
  func.func @transform_2(%arg0: i32) -> (i32, i32) {
    %c0_i32 = arith.constant 0 : i32
    %c0_i32_0 = arith.constant 0 : i32
    return %arg0, %c0_i32 : i32, i32
  }
}

</mosaic_0001>

<llo_original>
// kernel: tpu_custom_call.1
$region0: #{tpu_custom_call.1}
  #allocation0 [shape = 'u32[]', space=smem, size = 0x4, offset = 0x4, fixed_abs, tag = 'smem constant byte address 0x4 - core index']
  #allocation1 [shape = 'u32[72,128]{1,0:T(1,128)}', space=vmem, size = 0x9000, scoped, tag = 'internal scratch']
  %s0 = inlined_call_operand.hbm [shape: f32[64,256], index: 0, kind: input, shape index: {}]
  %s1 = inlined_call_operand.hbm [shape: f32[256,256], index: 1, kind: input, shape index: {}]
  %s2 = inlined_call_operand.hbm [shape: f32[64,256], index: 2, kind: output, shape index: {}]
  %s3 = sld [smem:[#allocation0]]
  $region26: #{tpu_custom_call.1} parent=0
    _
  %s5 = ssub.s32 1, %s3
  %s6 = scalar_select 0, %s5, %s3
  $region1: #{tpu_custom_call.1} parent=0
    #allocation2 [shape = 'u8[65536]{0}', space=vmem, size = 0x10000, scoped, tag = 'input window, operand 0, single buffered']
    #allocation3 [shape = 's32[1]{0}', space=sflag, size = 0x4, scoped, tag = 'scoped memory for tpu_custom_call.1']
    #allocation4 [shape = 's32[1]{0}', space=sflag, size = 0x4, scoped, tag = 'scoped memory for tpu_custom_call.1']
    #allocation5 [shape = 'u8[262144]{0}', space=vmem, size = 0x40000, scoped, tag = 'input window, operand 1, single buffered']
    #allocation6 [shape = 's32[1]{0}', space=sflag, size = 0x4, scoped, tag = 'scoped memory for tpu_custom_call.1']
    #allocation7 [shape = 'u8[65536]{0}', space=vmem, size = 0x10000, scoped, tag = 'output window, operand 0, single buffered']
    %7 = vsyncpa [#allocation3], 0
    %8 = vsyncpa [#allocation6], 0
    %9 = vsyncpa [#allocation4], 0
    // Predicated region
    $region2: #{tpu_custom_call.1} parent=1 // pred_check
      _
    $region3: #{tpu_custom_call.1} parent=1 // pred_check_branch
      %11 = sbr.rel (0) target = $region5
    $region4: #{tpu_custom_call.1} parent=1 // pred_region
      %13 = vsyncadd [#allocation3], 0
      %s14 = sshll.u32 %s0, 4
      %s15 = int_to_ptr.hbm [resolvable:$true] %s14
      %s16 = sshll.u32 [#allocation2], 4
      %s17 = int_to_ptr.vmem [resolvable:$true] %s16
      %22 = dma.hbm_to_vmem [thread:$0]  %s15, 2048, %s17, [#allocation3], 256, 256, 16
    $region5: #{tpu_custom_call.1} parent=1 // pred_fallthru
      _
    // Predicated region
    $region6: #{tpu_custom_call.1} parent=1 // pred_check
      _
    $region7: #{tpu_custom_call.1} parent=1 // pred_check_branch
      %24 = sbr.rel (0) target = $region9
    $region8: #{tpu_custom_call.1} parent=1 // pred_region
      %26 = vsyncadd [#allocation6], 0
      %s27 = sshll.u32 %s1, 4
      %s28 = int_to_ptr.hbm [resolvable:$true] %s27
      %s29 = sshll.u32 [#allocation5], 4
      %s30 = int_to_ptr.vmem [resolvable:$true] %s29
      %35 = dma.hbm_to_vmem [thread:$0]  %s28, 8192, %s30, [#allocation6], 256, 256, 16
    $region9: #{tpu_custom_call.1} parent=1 // pred_fallthru
      _
    // Predicated region
    $region10: #{tpu_custom_call.1} parent=1 // pred_check
      _
    $region11: #{tpu_custom_call.1} parent=1 // pred_check_branch
      %37 = sbr.rel (0) target = $region13
    $region12: #{tpu_custom_call.1} parent=1 // pred_region
      %39 = dma.done [#allocation3], 2048
    $region13: #{tpu_custom_call.1} parent=1 // pred_fallthru
      _
    // Predicated region
    $region14: #{tpu_custom_call.1} parent=1 // pred_check
      _
    $region15: #{tpu_custom_call.1} parent=1 // pred_check_branch
      %41 = sbr.rel (0) target = $region17
    $region16: #{tpu_custom_call.1} parent=1 // pred_region
      %43 = dma.done [#allocation6], 8192
    $region17: #{tpu_custom_call.1} parent=1 // pred_fallthru
      _
    %v44 = vld [vmem:[#allocation2] sm:$0xff]
    %v45 = vld [vmem:[#allocation2 + $0x8] sm:$0xff]
    %v46 = vld [vmem:[#allocation2 + $0x10] sm:$0xff]
    %v47 = vld [vmem:[#allocation2 + $0x18] sm:$0xff]
    %v48 = vld [vmem:[#allocation2 + $0x20] sm:$0xff]
    %v49 = vld [vmem:[#allocation2 + $0x28] sm:$0xff]
    %v50 = vld [vmem:[#allocation2 + $0x30] sm:$0xff]
    %v51 = vld [vmem:[#allocation2 + $0x38] sm:$0xff]
    %v52 = vld [vmem:[#allocation2 + $0x40] sm:$0xff]
    %v53 = vld [vmem:[#allocation2 + $0x48] sm:$0xff]
    %v54 = vld [vmem:[#allocation2 + $0x50] sm:$0xff]
    %v55 = vld [vmem:[#allocation2 + $0x58] sm:$0xff]
    %v56 = vld [vmem:[#allocation2 + $0x60] sm:$0xff]
    %v57 = vld [vmem:[#allocation2 + $0x68] sm:$0xff]
    %v58 = vld [vmem:[#allocation2 + $0x70] sm:$0xff]
    %v59 = vld [vmem:[#allocation2 + $0x78] sm:$0xff]
    %v60 = vld [vmem:[#allocation5] sm:$0xff]
    %v61 = vld [vmem:[#allocation5 + $0x8] sm:$0xff]
    %v62 = vld [vmem:[#allocation5 + $0x10] sm:$0xff]
    %v63 = vld [vmem:[#allocation5 + $0x18] sm:$0xff]
    %v64 = vld [vmem:[#allocation5 + $0x20] sm:$0xff]
    %v65 = vld [vmem:[#allocation5 + $0x28] sm:$0xff]
    %v66 = vld [vmem:[#allocation5 + $0x30] sm:$0xff]
    %v67 = vld [vmem:[#allocation5 + $0x38] sm:$0xff]
    %v68 = vld [vmem:[#allocation5 + $0x40] sm:$0xff]
    %v69 = vld [vmem:[#allocation5 + $0x48] sm:$0xff]
    %v70 = vld [vmem:[#allocation5 + $0x50] sm:$0xff]
    %v71 = vld [vmem:[#allocation5 + $0x58] sm:$0xff]
    %v72 = vld [vmem:[#allocation5 + $0x60] sm:$0xff]
    %v73 = vld [vmem:[#allocation5 + $0x68] sm:$0xff]
    %v74 = vld [vmem:[#allocation5 + $0x70] sm:$0xff]
    %v75 = vld [vmem:[#allocation5 + $0x78] sm:$0xff]
    %v76 = vld [vmem:[#allocation5 + $0x80] sm:$0xff]
    %v77 = vld [vmem:[#allocation5 + $0x88] sm:$0xff]
    %v78 = vld [vmem:[#allocation5 + $0x90] sm:$0xff]
    %v79 = vld [vmem:[#allocation5 + $0x98] sm:$0xff]
    %v80 = vld [vmem:[#allocation5 + $0xa0] sm:$0xff]
    %v81 = vld [vmem:[#allocation5 + $0xa8] sm:$0xff]
    %v82 = vld [vmem:[#allocation5 + $0xb0] sm:$0xff]
    %v83 = vld [vmem:[#allocation5 + $0xb8] sm:$0xff]
    %v84 = vld [vmem:[#allocation5 + $0xc0] sm:$0xff]
    %v85 = vld [vmem:[#allocation5 + $0xc8] sm:$0xff]
    %v86 = vld [vmem:[#allocation5 + $0xd0] sm:$0xff]
    %v87 = vld [vmem:[#allocation5 + $0xd8] sm:$0xff]
    %v88 = vld [vmem:[#allocation5 + $0xe0] sm:$0xff]
    %v89 = vld [vmem:[#allocation5 + $0xe8] sm:$0xff]
    %v90 = vld [vmem:[#allocation5 + $0xf0] sm:$0xff]
    %v91 = vld [vmem:[#allocation5 + $0xf8] sm:$0xff]
    %v92 = vld [vmem:[#allocation5 + $0x100] sm:$0xff]
    %v93 = vld [vmem:[#allocation5 + $0x108] sm:$0xff]
    %v94 = vld [vmem:[#allocation5 + $0x110] sm:$0xff]
    %v95 = vld [vmem:[#allocation5 + $0x118] sm:$0xff]
    %v96 = vld [vmem:[#allocation5 + $0x120] sm:$0xff]
    %v97 = vld [vmem:[#allocation5 + $0x128] sm:$0xff]
    %v98 = vld [vmem:[#allocation5 + $0x130] sm:$0xff]
    %v99 = vld [vmem:[#allocation5 + $0x138] sm:$0xff]
    %v100 = vld [vmem:[#allocation5 + $0x140] sm:$0xff]
    %v101 = vld [vmem:[#allocation5 + $0x148] sm:$0xff]
    %v102 = vld [vmem:[#allocation5 + $0x150] sm:$0xff]
    %v103 = vld [vmem:[#allocation5 + $0x158] sm:$0xff]
    %v104 = vld [vmem:[#allocation5 + $0x160] sm:$0xff]
    %v105 = vld [vmem:[#allocation5 + $0x168] sm:$0xff]
    %v106 = vld [vmem:[#allocation5 + $0x170] sm:$0xff]
    %v107 = vld [vmem:[#allocation5 + $0x178] sm:$0xff]
    %v108 = vld [vmem:[#allocation5 + $0x180] sm:$0xff]
    %v109 = vld [vmem:[#allocation5 + $0x188] sm:$0xff]
    %v110 = vld [vmem:[#allocation5 + $0x190] sm:$0xff]
    %v111 = vld [vmem:[#allocation5 + $0x198] sm:$0xff]
    %v112 = vld [vmem:[#allocation5 + $0x1a0] sm:$0xff]
    %v113 = vld [vmem:[#allocation5 + $0x1a8] sm:$0xff]
    %v114 = vld [vmem:[#allocation5 + $0x1b0] sm:$0xff]
    %v115 = vld [vmem:[#allocation5 + $0x1b8] sm:$0xff]
    %v116 = vld [vmem:[#allocation5 + $0x1c0] sm:$0xff]
    %v117 = vld [vmem:[#allocation5 + $0x1c8] sm:$0xff]
    %v118 = vld [vmem:[#allocation5 + $0x1d0] sm:$0xff]
    %v119 = vld [vmem:[#allocation5 + $0x1d8] sm:$0xff]
    %v120 = vld [vmem:[#allocation5 + $0x1e0] sm:$0xff]
    %v121 = vld [vmem:[#allocation5 + $0x1e8] sm:$0xff]
    %v122 = vld [vmem:[#allocation5 + $0x1f0] sm:$0xff]
    %v123 = vld [vmem:[#allocation5 + $0x1f8] sm:$0xff]
    %124 = vmatpush.msra.mxu0 %v90
    %125 = vmatpush.msra.mxu0 %v88
    %126 = vmatpush.msra.mxu0 %v86
    %127 = vmatpush.msra.mxu0 %v84
    %128 = vmatpush.msra.mxu0 %v82
    %129 = vmatpush.msra.mxu0 %v80
    %130 = vmatpush.msra.mxu0 %v78
    %131 = vmatpush.msra.mxu0 %v76
    %132 = vmatpush.msra.mxu0 %v74
    %133 = vmatpush.msra.mxu0 %v72
    %134 = vmatpush.msra.mxu0 %v70
    %135 = vmatpush.msra.mxu0 %v68
    %136 = vmatpush.msra.mxu0 %v66
    %137 = vmatpush.msra.mxu0 %v64
    %138 = vmatpush.msra.mxu0 %v62
    %139 = vmatpush.msra.mxu0 %v60
    %140 = vmatmul.f32.gmra.mxu0 %v44
    %v141 = vpop.f32.mrf.mxu0
    %v142 = vadd.f32 0.0, %v141
    %143 = vmatmul.f32.gmra.mxu0 %v46
    %v144 = vpop.f32.mrf.mxu0
    %v145 = vadd.f32 0.0, %v144
    %146 = vmatmul.f32.gmra.mxu0 %v48
    %v147 = vpop.f32.mrf.mxu0
    %v148 = vadd.f32 0.0, %v147
    %149 = vmatmul.f32.gmra.mxu0 %v50
    %v150 = vpop.f32.mrf.mxu0
    %v151 = vadd.f32 0.0, %v150
    %152 = vmatmul.f32.gmra.mxu0 %v52
    %v153 = vpop.f32.mrf.mxu0
    %v154 = vadd.f32 0.0, %v153
    %155 = vmatmul.f32.gmra.mxu0 %v54
    %v156 = vpop.f32.mrf.mxu0
    %v157 = vadd.f32 0.0, %v156
    %158 = vmatmul.f32.gmra.mxu0 %v56
    %v159 = vpop.f32.mrf.mxu0
    %v160 = vadd.f32 0.0, %v159
    %161 = vmatmul.f32.gmra.mxu0 %v58
    %v162 = vpop.f32.mrf.mxu0
    %v163 = vadd.f32 0.0, %v162
    %164 = vdwg.mxu0
    %165 = vmatpush.msra.mxu0 %v122
    %166 = vmatpush.msra.mxu0 %v120
    %167 = vmatpush.msra.mxu0 %v118
    %168 = vmatpush.msra.mxu0 %v116
    %169 = vmatpush.msra.mxu0 %v114
    %170 = vmatpush.msra.mxu0 %v112
    %171 = vmatpush.msra.mxu0 %v110
    %172 = vmatpush.msra.mxu0 %v108
    %173 = vmatpush.msra.mxu0 %v106
    %174 = vmatpush.msra.mxu0 %v104
    %175 = vmatpush.msra.mxu0 %v102
    %176 = vmatpush.msra.mxu0 %v100
    %177 = vmatpush.msra.mxu0 %v98
    %178 = vmatpush.msra.mxu0 %v96
    %179 = vmatpush.msra.mxu0 %v94
    %180 = vmatpush.msra.mxu0 %v92
    %181 = vmatmul.f32.gmra.mxu0 %v45
    %v182 = vpop.f32.mrf.mxu0
    %v183 = vadd.f32 %v142, %v182
    %184 = vmatmul.f32.gmra.mxu0 %v47
    %v185 = vpop.f32.mrf.mxu0
    %v186 = vadd.f32 %v145, %v185
    %187 = vmatmul.f32.gmra.mxu0 %v49
    %v188 = vpop.f32.mrf.mxu0
    %v189 = vadd.f32 %v148, %v188
    %190 = vmatmul.f32.gmra.mxu0 %v51
    %v191 = vpop.f32.mrf.mxu0
    %v192 = vadd.f32 %v151, %v191
    %193 = vmatmul.f32.gmra.mxu0 %v53
    %v194 = vpop.f32.mrf.mxu0
    %v195 = vadd.f32 %v154, %v194
    %196 = vmatmul.f32.gmra.mxu0 %v55
    %v197 = vpop.f32.mrf.mxu0
    %v198 = vadd.f32 %v157, %v197
    %199 = vmatmul.f32.gmra.mxu0 %v57
    %v200 = vpop.f32.mrf.mxu0
    %v201 = vadd.f32 %v160, %v200
    %202 = vmatmul.f32.gmra.mxu0 %v59
    %v203 = vpop.f32.mrf.mxu0
    %v204 = vadd.f32 %v163, %v203
    %205 = vdwg.mxu0
    %206 = vmatpush.msra.mxu0 %v91
    %207 = vmatpush.msra.mxu0 %v89
    %208 = vmatpush.msra.mxu0 %v87
    %209 = vmatpush.msra.mxu0 %v85
    %210 = vmatpush.msra.mxu0 %v83
    %211 = vmatpush.msra.mxu0 %v81
    %212 = vmatpush.msra.mxu0 %v79
    %213 = vmatpush.msra.mxu0 %v77
    %214 = vmatpush.msra.mxu0 %v75
    %215 = vmatpush.msra.mxu0 %v73
    %216 = vmatpush.msra.mxu0 %v71
    %217 = vmatpush.msra.mxu0 %v69
    %218 = vmatpush.msra.mxu0 %v67
    %219 = vmatpush.msra.mxu0 %v65
    %220 = vmatpush.msra.mxu0 %v63
    %221 = vmatpush.msra.mxu0 %v61
    %222 = vmatmul.f32.gmra.mxu0 %v44
    %v223 = vpop.f32.mrf.mxu0
    %v224 = vadd.f32 0.0, %v223
    %225 = vmatmul.f32.gmra.mxu0 %v46
    %v226 = vpop.f32.mrf.mxu0
    %v227 = vadd.f32 0.0, %v226
    %228 = vmatmul.f32.gmra.mxu0 %v48
    %v229 = vpop.f32.mrf.mxu0
    %v230 = vadd.f32 0.0, %v229
    %231 = vmatmul.f32.gmra.mxu0 %v50
    %v232 = vpop.f32.mrf.mxu0
    %v233 = vadd.f32 0.0, %v232
    %234 = vmatmul.f32.gmra.mxu0 %v52
    %v235 = vpop.f32.mrf.mxu0
    %v236 = vadd.f32 0.0, %v235
    %237 = vmatmul.f32.gmra.mxu0 %v54
    %v238 = vpop.f32.mrf.mxu0
    %v239 = vadd.f32 0.0, %v238
    %240 = vmatmul.f32.gmra.mxu0 %v56
    %v241 = vpop.f32.mrf.mxu0
    %v242 = vadd.f32 0.0, %v241
    %243 = vmatmul.f32.gmra.mxu0 %v58
    %v244 = vpop.f32.mrf.mxu0
    %v245 = vadd.f32 0.0, %v244
    %246 = vdwg.mxu0
    %247 = vmatpush.msra.mxu0 %v123
    %248 = vmatpush.msra.mxu0 %v121
    %249 = vmatpush.msra.mxu0 %v119
    %250 = vmatpush.msra.mxu0 %v117
    %251 = vmatpush.msra.mxu0 %v115
    %252 = vmatpush.msra.mxu0 %v113
    %253 = vmatpush.msra.mxu0 %v111
    %254 = vmatpush.msra.mxu0 %v109
    %255 = vmatpush.msra.mxu0 %v107
    %256 = vmatpush.msra.mxu0 %v105
    %257 = vmatpush.msra.mxu0 %v103
    %258 = vmatpush.msra.mxu0 %v101
    %259 = vmatpush.msra.mxu0 %v99
    %260 = vmatpush.msra.mxu0 %v97
    %261 = vmatpush.msra.mxu0 %v95
    %262 = vmatpush.msra.mxu0 %v93
    %263 = vmatmul.f32.gmra.mxu0 %v45
    %v264 = vpop.f32.mrf.mxu0
    %v265 = vadd.f32 %v224, %v264
    %266 = vmatmul.f32.gmra.mxu0 %v47
    %v267 = vpop.f32.mrf.mxu0
    %v268 = vadd.f32 %v227, %v267
    %269 = vmatmul.f32.gmra.mxu0 %v49
    %v270 = vpop.f32.mrf.mxu0
    %v271 = vadd.f32 %v230, %v270
    %272 = vmatmul.f32.gmra.mxu0 %v51
    %v273 = vpop.f32.mrf.mxu0
    %v274 = vadd.f32 %v233, %v273
    %275 = vmatmul.f32.gmra.mxu0 %v53
    %v276 = vpop.f32.mrf.mxu0
    %v277 = vadd.f32 %v236, %v276
    %278 = vmatmul.f32.gmra.mxu0 %v55
    %v279 = vpop.f32.mrf.mxu0
    %v280 = vadd.f32 %v239, %v279
    %281 = vmatmul.f32.gmra.mxu0 %v57
    %v282 = vpop.f32.mrf.mxu0
    %v283 = vadd.f32 %v242, %v282
    %284 = vmatmul.f32.gmra.mxu0 %v59
    %v285 = vpop.f32.mrf.mxu0
    %v286 = vadd.f32 %v245, %v285
    %287 = vdwg.mxu0
    %288 = vst [vmem:[#allocation7] sm:$0xff] %v183
    %289 = vst [vmem:[#allocation7 + $0x8] sm:$0xff] %v265
    %290 = vst [vmem:[#allocation7 + $0x10] sm:$0xff] %v186
    %291 = vst [vmem:[#allocation7 + $0x18] sm:$0xff] %v268
    %292 = vst [vmem:[#allocation7 + $0x20] sm:$0xff] %v189
    %293 = vst [vmem:[#allocation7 + $0x28] sm:$0xff] %v271
    %294 = vst [vmem:[#allocation7 + $0x30] sm:$0xff] %v192
    %295 = vst [vmem:[#allocation7 + $0x38] sm:$0xff] %v274
    %296 = vst [vmem:[#allocation7 + $0x40] sm:$0xff] %v195
    %297 = vst [vmem:[#allocation7 + $0x48] sm:$0xff] %v277
    %298 = vst [vmem:[#allocation7 + $0x50] sm:$0xff] %v198
    %299 = vst [vmem:[#allocation7 + $0x58] sm:$0xff] %v280
    %300 = vst [vmem:[#allocation7 + $0x60] sm:$0xff] %v201
    %301 = vst [vmem:[#allocation7 + $0x68] sm:$0xff] %v283
    %302 = vst [vmem:[#allocation7 + $0x70] sm:$0xff] %v204
    %303 = vst [vmem:[#allocation7 + $0x78] sm:$0xff] %v286
    // Predicated region
    $region18: #{tpu_custom_call.1} parent=1 // pred_check
      _
    $region19: #{tpu_custom_call.1} parent=1 // pred_check_branch
      %305 = sbr.rel (0) target = $region21
    $region20: #{tpu_custom_call.1} parent=1 // pred_region
      %307 = vsyncadd [#allocation4], 0
      %s308 = sshll.u32 [#allocation7], 4
      %s309 = int_to_ptr.vmem [resolvable:$true] %s308
      %s310 = sshll.u32 %s2, 4
      %s311 = int_to_ptr.hbm [resolvable:$true] %s310
      %316 = dma.vmem_to_hbm [thread:$0]  %s309, 2048, %s311, [#allocation4], 256, 256, 16
    $region21: #{tpu_custom_call.1} parent=1 // pred_fallthru
      _
    // Predicated region
    $region22: #{tpu_custom_call.1} parent=1 // pred_check
      _
    $region23: #{tpu_custom_call.1} parent=1 // pred_check_branch
      %318 = sbr.rel (0) target = $region25
    $region24: #{tpu_custom_call.1} parent=1 // pred_region
      %320 = dma.done [#allocation4], 2048
    $region25: #{tpu_custom_call.1} parent=1 // pred_fallthru
      _
    %321 = vsyncpa [#allocation3], 1
    %322 = vsyncpa [#allocation6], 1
    %323 = vsyncpa [#allocation4], 1

</llo_original>
